<compile_context>
chip_gen: v7x
topology: tpu7x:2x2x1
jax: 0.10.0
libtpu: 0.0.40
codegen_flags: <defaults>
</compile_context>

<pallas_src>
import jax
import jax.numpy as jnp
from jax.experimental import pallas as pl
from jax.experimental.pallas import tpu as pltpu

FUSION_TYPE = "mul"  # config.fusion_type


def _round_up(x, m):
    return (x + m - 1) // m * m


def _classifier_kernel(q_ref, v_ref,
                       wq_ref, bq_ref,
                       wv_ref, bv_ref,
                       w1_ref, b1_ref,
                       w2_ref, b2_ref,
                       joint_ref, logits_ref):
    # q_net / v_net: weight-normed Linear + ReLU (dropout p=0 -> identity).
    # Activations/weights arrive in bf16; accumulate in f32 on the MXU and do
    # bias-add / ReLU / fusion-mul in f32 on the VPU.
    q = jnp.dot(q_ref[...], wq_ref[...], preferred_element_type=jnp.float32) + bq_ref[...]
    q = jnp.maximum(q, 0.0)
    v = jnp.dot(v_ref[...], wv_ref[...], preferred_element_type=jnp.float32) + bv_ref[...]
    v = jnp.maximum(v, 0.0)

    # fusion (config.fusion_type == 'mul')
    joint = q * v
    joint_ref[...] = joint.astype(joint_ref.dtype)

    # main: Linear -> ReLU -> (Dropout p=0) -> Linear
    h = jnp.dot(joint.astype(jnp.bfloat16), w1_ref[...],
                preferred_element_type=jnp.float32) + b1_ref[...]
    h = jnp.maximum(h, 0.0)
    logits = jnp.dot(h.astype(jnp.bfloat16), w2_ref[...],
                     preferred_element_type=jnp.float32) + b2_ref[...]
    logits_ref[...] = logits.astype(logits_ref.dtype)


def simple_classifier_forward(q_emb, v_emb, params, *, batch_tile=256):
    """q_emb: [B, in_q], v_emb: [B, in_v] -> (joint [B, hid0], logits [B, out])."""
    B, in_q = q_emb.shape
    in_v = v_emb.shape[1]
    hid0 = params["wq"].shape[1]
    hid1 = params["w1"].shape[1]
    out_dim = params["w2"].shape[1]

    # --- lane-dense padding (multiples of 128 on every feature axis) ---------
    in_q_p = _round_up(in_q, 128)
    in_v_p = _round_up(in_v, 128)
    hid0_p = _round_up(hid0, 128)
    hid1_p = _round_up(hid1, 128)
    out_p = _round_up(out_dim, 128)

    # --- batch tiling ---------------------------------------------------------
    TB = min(batch_tile, _round_up(B, 8))   # multiple of 8, capped at 256 rows
    B_p = _round_up(B, TB)
    grid = (B_p // TB,)

    def pad2(a, rows, cols):
        return jnp.pad(a, ((0, rows - a.shape[0]), (0, cols - a.shape[1])))

    # Activations and weights in bf16 (MXU fast path, half the DMA bytes);
    # biases stay f32 so the epilogue add/ReLU runs in f32.
    q_p = pad2(q_emb, B_p, in_q_p).astype(jnp.bfloat16)
    v_p = pad2(v_emb, B_p, in_v_p).astype(jnp.bfloat16)
    wq = pad2(params["wq"], in_q_p, hid0_p).astype(jnp.bfloat16)
    wv = pad2(params["wv"], in_v_p, hid0_p).astype(jnp.bfloat16)
    w1 = pad2(params["w1"], hid0_p, hid1_p).astype(jnp.bfloat16)
    w2 = pad2(params["w2"], hid1_p, out_p).astype(jnp.bfloat16)
    bq = pad2(params["bq"], 1, hid0_p).astype(jnp.float32)
    bv = pad2(params["bv"], 1, hid0_p).astype(jnp.float32)
    b1 = pad2(params["b1"], 1, hid1_p).astype(jnp.float32)
    b2 = pad2(params["b2"], 1, out_p).astype(jnp.float32)

    # Activation tiles move with the batch grid; weights/biases are pinned to a
    # constant block so Pallas keeps them VMEM-resident across grid steps.
    def act_spec(cols):
        return pl.BlockSpec((TB, cols), lambda i: (i, 0))

    def pinned_spec(rows, cols):
        return pl.BlockSpec((rows, cols), lambda i: (0, 0))

    in_specs = [
        act_spec(in_q_p), act_spec(in_v_p),
        pinned_spec(in_q_p, hid0_p), pinned_spec(1, hid0_p),
        pinned_spec(in_v_p, hid0_p), pinned_spec(1, hid0_p),
        pinned_spec(hid0_p, hid1_p), pinned_spec(1, hid1_p),
        pinned_spec(hid1_p, out_p), pinned_spec(1, out_p),
    ]
    out_specs = (act_spec(hid0_p), act_spec(out_p))

    flops = 2 * B_p * (in_q_p * hid0_p + in_v_p * hid0_p
                       + hid0_p * hid1_p + hid1_p * out_p)
    bytes_accessed = (
        2 * B_p * (in_q_p + in_v_p)                                   # bf16 act in
        + 2 * (in_q_p * hid0_p + in_v_p * hid0_p
               + hid0_p * hid1_p + hid1_p * out_p)                    # bf16 weights
        + 4 * (2 * hid0_p + hid1_p + out_p)                           # f32 biases
        + 4 * B_p * (hid0_p + out_p)                                  # f32 outputs
    )

    kernel = pl.pallas_call(
        _classifier_kernel,
        out_shape=(
            jax.ShapeDtypeStruct((B_p, hid0_p), jnp.float32),
            jax.ShapeDtypeStruct((B_p, out_p), jnp.float32),
        ),
        grid=grid,
        in_specs=in_specs,
        out_specs=out_specs,
        compiler_params=pltpu.CompilerParams(
            dimension_semantics=("parallel",),
        ),
        cost_estimate=pl.CostEstimate(
            flops=flops, transcendentals=0, bytes_accessed=bytes_accessed),
    )

    joint_p, logits_p = kernel(q_p, v_p, wq, bq, wv, bv, w1, b1, w2, b2)
    # Slice away batch / lane padding (padded columns are exactly zero).
    return joint_p[:B, :hid0], logits_p[:B, :out_dim]


def _weight_norm(w, g):
    # PyTorch weight_norm with dim=None: w = g * v / ||v||_F (g scalar).
    return g * w / jnp.sqrt(jnp.sum(w * w))


def init_params(key, in_dim, hid_dim, out_dim):
    in_q, in_v = in_dim
    hid0, hid1 = hid_dim
    ks = jax.random.split(key, 8)

    def lin(kw, kb, fan_in, fan_out):
        bound = 1.0 / jnp.sqrt(fan_in)
        w = jax.random.uniform(kw, (fan_in, fan_out), jnp.float32, -bound, bound)
        b = jax.random.uniform(kb, (1, fan_out), jnp.float32, -bound, bound)
        return w, b

    wq, bq = lin(ks[0], ks[1], in_q, hid0)
    wv, bv = lin(ks[2], ks[3], in_v, hid0)
    w1, b1 = lin(ks[4], ks[5], hid0, hid1)
    w2, b2 = lin(ks[6], ks[7], hid1, out_dim)

    # weight_norm is applied to the FCNet linears; at init g = ||v||_F so the
    # effective weight equals the raw init — apply explicitly for fidelity.
    gq = jnp.sqrt(jnp.sum(wq * wq))
    gv = jnp.sqrt(jnp.sum(wv * wv))
    wq = _weight_norm(wq, gq)
    wv = _weight_norm(wv, gv)

    return {"wq": wq, "bq": bq, "wv": wv, "bv": bv,
            "w1": w1, "b1": b1, "w2": w2, "b2": b2}


def _reference(q_emb, v_emb, p):
    # Mirrors the kernel's precision: bf16 matmul operands, f32 accumulation,
    # f32 elementwise.
    bf = jnp.bfloat16

    def mm(x, w):
        return jnp.dot(x.astype(bf), w.astype(bf),
                       preferred_element_type=jnp.float32)

    q = jnp.maximum(mm(q_emb, p["wq"]) + p["bq"], 0.0)
    v = jnp.maximum(mm(v_emb, p["wv"]) + p["bv"], 0.0)
    joint = q * v
    h = jnp.maximum(mm(joint, p["w1"]) + p["b1"], 0.0)
    logits = mm(h, p["w2"]) + p["b2"]
    return joint, logits


if __name__ == "__main__":
    # Small shapes consistent with the module:
    #   in_dim = (32, 48), hid_dim = (64, 128), out_dim = 16, batch = 8
    B = 8
    in_dim = (32, 48)
    hid_dim = (64, 128)
    out_dim = 16

    key = jax.random.PRNGKey(0)
    kq, kv, kp = jax.random.split(key, 3)
    q_emb = jax.random.normal(kq, (B, in_dim[0]), jnp.float32)
    v_emb = jax.random.normal(kv, (B, in_dim[1]), jnp.float32)
    params = init_params(kp, in_dim, hid_dim, out_dim)

    joint, logits = simple_classifier_forward(q_emb, v_emb, params)
    jax.block_until_ready((joint, logits))

    # Sanity-check against a precision-matched pure-JAX reference.
    joint_ref, logits_ref = _reference(q_emb, v_emb, params)
    assert joint.shape == (B, hid_dim[0]) and logits.shape == (B, out_dim)
    assert jnp.allclose(joint, joint_ref, atol=2e-3, rtol=2e-3)
    assert jnp.allclose(logits, logits_ref, atol=2e-3, rtol=2e-3)

    print("KERNEL_OK")
</pallas_src>

<mosaic_0001>
module attributes {stable_mosaic.version = 11 : i64} {
  func.func @_classifier_kernel(%arg0: i32, %arg1: memref<8x128xbf16, #tpu.memory_space<vmem>>, %arg2: memref<8x128xbf16, #tpu.memory_space<vmem>>, %arg3: memref<128x128xbf16, #tpu.memory_space<vmem>>, %arg4: memref<1x128xf32, #tpu.memory_space<vmem>>, %arg5: memref<128x128xbf16, #tpu.memory_space<vmem>>, %arg6: memref<1x128xf32, #tpu.memory_space<vmem>>, %arg7: memref<128x128xbf16, #tpu.memory_space<vmem>>, %arg8: memref<1x128xf32, #tpu.memory_space<vmem>>, %arg9: memref<128x128xbf16, #tpu.memory_space<vmem>>, %arg10: memref<1x128xf32, #tpu.memory_space<vmem>>, %arg11: memref<8x128xf32, #tpu.memory_space<vmem>>, %arg12: memref<8x128xf32, #tpu.memory_space<vmem>>) attributes {dimension_semantics = [#tpu.dimension_semantics<parallel>], iteration_bounds = array<i64: 1>, scalar_prefetch = 0 : i64, scratch_operands = 0 : i64, tpu.core_type = #tpu.core_type<tc>, window_params = [{transform_indices = @transform_0, window_bounds = array<i64: 8, 128>}, {transform_indices = @transform_1, window_bounds = array<i64: 8, 128>}, {pipeline_mode = #tpu.pipeline_mode<synchronous>, transform_indices = @transform_2, window_bounds = array<i64: 128, 128>}, {pipeline_mode = #tpu.pipeline_mode<synchronous>, transform_indices = @transform_3, window_bounds = array<i64: 1, 128>}, {pipeline_mode = #tpu.pipeline_mode<synchronous>, transform_indices = @transform_4, window_bounds = array<i64: 128, 128>}, {pipeline_mode = #tpu.pipeline_mode<synchronous>, transform_indices = @transform_5, window_bounds = array<i64: 1, 128>}, {pipeline_mode = #tpu.pipeline_mode<synchronous>, transform_indices = @transform_6, window_bounds = array<i64: 128, 128>}, {pipeline_mode = #tpu.pipeline_mode<synchronous>, transform_indices = @transform_7, window_bounds = array<i64: 1, 128>}, {pipeline_mode = #tpu.pipeline_mode<synchronous>, transform_indices = @transform_8, window_bounds = array<i64: 128, 128>}, {pipeline_mode = #tpu.pipeline_mode<synchronous>, transform_indices = @transform_9, window_bounds = array<i64: 1, 128>}, {transform_indices = @transform_10, window_bounds = array<i64: 8, 128>}, {transform_indices = @transform_11, window_bounds = array<i64: 8, 128>}]} {
    %c0 = arith.constant 0 : index
    %c0_0 = arith.constant 0 : index
    %0 = vector.load %arg1[%c0, %c0_0] : memref<8x128xbf16, #tpu.memory_space<vmem>>, vector<8x128xbf16>
    %c0_1 = arith.constant 0 : index
    %c0_2 = arith.constant 0 : index
    %1 = vector.load %arg3[%c0_1, %c0_2] : memref<128x128xbf16, #tpu.memory_space<vmem>>, vector<128x128xbf16>
    %cst = arith.constant dense<0.000000e+00> : vector<8x128xf32>
    %2 = tpu.matmul %0, %1, %cst {dimension_numbers = #tpu.dot_dimension_numbers<[1], [0], [0], [1], [0, 0, 1, 1], [], []>} : vector<8x128xbf16>, vector<128x128xbf16>, vector<8x128xf32> -> vector<8x128xf32>
    %c0_3 = arith.constant 0 : index
    %c0_4 = arith.constant 0 : index
    %3 = vector.load %arg4[%c0_3, %c0_4] : memref<1x128xf32, #tpu.memory_space<vmem>>, vector<1x128xf32>
    %4 = vector.broadcast %3 : vector<1x128xf32> to vector<8x128xf32>
    %5 = arith.addf %2, %4 : vector<8x128xf32>
    %cst_5 = arith.constant 0.000000e+00 : f32
    %6 = vector.broadcast %cst_5 : f32 to vector<8x128xf32>
    %7 = arith.maximumf %5, %6 : vector<8x128xf32>
    %c0_6 = arith.constant 0 : index
    %c0_7 = arith.constant 0 : index
    %8 = vector.load %arg2[%c0_6, %c0_7] : memref<8x128xbf16, #tpu.memory_space<vmem>>, vector<8x128xbf16>
    %c0_8 = arith.constant 0 : index
    %c0_9 = arith.constant 0 : index
    %9 = vector.load %arg5[%c0_8, %c0_9] : memref<128x128xbf16, #tpu.memory_space<vmem>>, vector<128x128xbf16>
    %cst_10 = arith.constant dense<0.000000e+00> : vector<8x128xf32>
    %10 = tpu.matmul %8, %9, %cst_10 {dimension_numbers = #tpu.dot_dimension_numbers<[1], [0], [0], [1], [0, 0, 1, 1], [], []>} : vector<8x128xbf16>, vector<128x128xbf16>, vector<8x128xf32> -> vector<8x128xf32>
    %c0_11 = arith.constant 0 : index
    %c0_12 = arith.constant 0 : index
    %11 = vector.load %arg6[%c0_11, %c0_12] : memref<1x128xf32, #tpu.memory_space<vmem>>, vector<1x128xf32>
    %12 = vector.broadcast %11 : vector<1x128xf32> to vector<8x128xf32>
    %13 = arith.addf %10, %12 : vector<8x128xf32>
    %cst_13 = arith.constant 0.000000e+00 : f32
    %14 = vector.broadcast %cst_13 : f32 to vector<8x128xf32>
    %15 = arith.maximumf %13, %14 : vector<8x128xf32>
    %16 = arith.mulf %7, %15 : vector<8x128xf32>
    %c0_14 = arith.constant 0 : index
    %c0_15 = arith.constant 0 : index
    %17 = vector.load %arg11[%c0_14, %c0_15] : memref<8x128xf32, #tpu.memory_space<vmem>>, vector<8x128xf32>
    tpu.vector_store %arg11[%c0_14, %c0_15], %16 {strides = array<i32>} : memref<8x128xf32, #tpu.memory_space<vmem>>, vector<8x128xf32>,
    %18 = arith.truncf %16 : vector<8x128xf32> to vector<8x128xbf16>
    %c0_16 = arith.constant 0 : index
    %c0_17 = arith.constant 0 : index
    %19 = vector.load %arg7[%c0_16, %c0_17] : memref<128x128xbf16, #tpu.memory_space<vmem>>, vector<128x128xbf16>
    %cst_18 = arith.constant dense<0.000000e+00> : vector<8x128xf32>
    %20 = tpu.matmul %18, %19, %cst_18 {dimension_numbers = #tpu.dot_dimension_numbers<[1], [0], [0], [1], [0, 0, 1, 1], [], []>} : vector<8x128xbf16>, vector<128x128xbf16>, vector<8x128xf32> -> vector<8x128xf32>
    %c0_19 = arith.constant 0 : index
    %c0_20 = arith.constant 0 : index
    %21 = vector.load %arg8[%c0_19, %c0_20] : memref<1x128xf32, #tpu.memory_space<vmem>>, vector<1x128xf32>
    %22 = vector.broadcast %21 : vector<1x128xf32> to vector<8x128xf32>
    %23 = arith.addf %20, %22 : vector<8x128xf32>
    %cst_21 = arith.constant 0.000000e+00 : f32
    %24 = vector.broadcast %cst_21 : f32 to vector<8x128xf32>
    %25 = arith.maximumf %23, %24 : vector<8x128xf32>
    %26 = arith.truncf %25 : vector<8x128xf32> to vector<8x128xbf16>
    %c0_22 = arith.constant 0 : index
    %c0_23 = arith.constant 0 : index
    %27 = vector.load %arg9[%c0_22, %c0_23] : memref<128x128xbf16, #tpu.memory_space<vmem>>, vector<128x128xbf16>
    %cst_24 = arith.constant dense<0.000000e+00> : vector<8x128xf32>
    %28 = tpu.matmul %26, %27, %cst_24 {dimension_numbers = #tpu.dot_dimension_numbers<[1], [0], [0], [1], [0, 0, 1, 1], [], []>} : vector<8x128xbf16>, vector<128x128xbf16>, vector<8x128xf32> -> vector<8x128xf32>
    %c0_25 = arith.constant 0 : index
    %c0_26 = arith.constant 0 : index
    %29 = vector.load %arg10[%c0_25, %c0_26] : memref<1x128xf32, #tpu.memory_space<vmem>>, vector<1x128xf32>
    %30 = vector.broadcast %29 : vector<1x128xf32> to vector<8x128xf32>
    %31 = arith.addf %28, %30 : vector<8x128xf32>
    %c0_27 = arith.constant 0 : index
    %c0_28 = arith.constant 0 : index
    %32 = vector.load %arg12[%c0_27, %c0_28] : memref<8x128xf32, #tpu.memory_space<vmem>>, vector<8x128xf32>
    tpu.vector_store %arg12[%c0_27, %c0_28], %31 {strides = array<i32>} : memref<8x128xf32, #tpu.memory_space<vmem>>, vector<8x128xf32>,
    return
  }
  func.func @transform_0(%arg0: i32) -> (i32, i32) {
    %c0_i32 = arith.constant 0 : i32
    %c0_i32_0 = arith.constant 0 : i32
    return %arg0, %c0_i32 : i32, i32
  }
  func.func @transform_1(%arg0: i32) -> (i32, i32) {
    %c0_i32 = arith.constant 0 : i32
    %c0_i32_0 = arith.constant 0 : i32
    return %arg0, %c0_i32 : i32, i32
  }
  func.func @transform_2(%arg0: i32) -> (i32, i32) {
    %c0_i32 = arith.constant 0 : i32
    %c0_i32_0 = arith.constant 0 : i32
    %c0_i32_1 = arith.constant 0 : i32
    return %c0_i32, %c0_i32_0 : i32, i32
  }
  func.func @transform_3(%arg0: i32) -> (i32, i32) {
    %c0_i32 = arith.constant 0 : i32
    %c0_i32_0 = arith.constant 0 : i32
    %c0_i32_1 = arith.constant 0 : i32
    return %c0_i32, %c0_i32_0 : i32, i32
  }
  func.func @transform_4(%arg0: i32) -> (i32, i32) {
    %c0_i32 = arith.constant 0 : i32
    %c0_i32_0 = arith.constant 0 : i32
    %c0_i32_1 = arith.constant 0 : i32
    return %c0_i32, %c0_i32_0 : i32, i32
  }
  func.func @transform_5(%arg0: i32) -> (i32, i32) {
    %c0_i32 = arith.constant 0 : i32
    %c0_i32_0 = arith.constant 0 : i32
    %c0_i32_1 = arith.constant 0 : i32
    return %c0_i32, %c0_i32_0 : i32, i32
  }
  func.func @transform_6(%arg0: i32) -> (i32, i32) {
    %c0_i32 = arith.constant 0 : i32
    %c0_i32_0 = arith.constant 0 : i32
    %c0_i32_1 = arith.constant 0 : i32
    return %c0_i32, %c0_i32_0 : i32, i32
  }
  func.func @transform_7(%arg0: i32) -> (i32, i32) {
    %c0_i32 = arith.constant 0 : i32
    %c0_i32_0 = arith.constant 0 : i32
    %c0_i32_1 = arith.constant 0 : i32
    return %c0_i32, %c0_i32_0 : i32, i32
  }
  func.func @transform_8(%arg0: i32) -> (i32, i32) {
    %c0_i32 = arith.constant 0 : i32
    %c0_i32_0 = arith.constant 0 : i32
    %c0_i32_1 = arith.constant 0 : i32
    return %c0_i32, %c0_i32_0 : i32, i32
  }
  func.func @transform_9(%arg0: i32) -> (i32, i32) {
    %c0_i32 = arith.constant 0 : i32
    %c0_i32_0 = arith.constant 0 : i32
    %c0_i32_1 = arith.constant 0 : i32
    return %c0_i32, %c0_i32_0 : i32, i32
  }
  func.func @transform_10(%arg0: i32) -> (i32, i32) {
    %c0_i32 = arith.constant 0 : i32
    %c0_i32_0 = arith.constant 0 : i32
    return %arg0, %c0_i32 : i32, i32
  }
  func.func @transform_11(%arg0: i32) -> (i32, i32) {
    %c0_i32 = arith.constant 0 : i32
    %c0_i32_0 = arith.constant 0 : i32
    return %arg0, %c0_i32 : i32, i32
  }
}

</mosaic_0001>

<llo_original>
// kernel: tpu_custom_call.1
$region0: #{tpu_custom_call.1}
  #allocation0 [shape = 'u32[]', space=smem, size = 0x4, offset = 0x4, fixed_abs, tag = 'smem constant byte address 0x4 - core index']
  #allocation1 [shape = 'u32[144,128]{1,0:T(1,128)}', space=vmem, size = 0x12000, scoped, tag = 'internal scratch']
  %s0 = inlined_call_operand.hbm [shape: bf16[8,128], index: 0, kind: input, shape index: {}]
  %s1 = inlined_call_operand.hbm [shape: bf16[8,128], index: 1, kind: input, shape index: {}]
  %s2 = inlined_call_operand.hbm [shape: bf16[128,128], index: 2, kind: input, shape index: {}]
  %s3 = inlined_call_operand.vmem [shape: f32[1,128], index: 3, kind: input, shape index: {}]
  %s4 = inlined_call_operand.hbm [shape: bf16[128,128], index: 4, kind: input, shape index: {}]
  %s5 = inlined_call_operand.vmem [shape: f32[1,128], index: 5, kind: input, shape index: {}]
  %s6 = inlined_call_operand.hbm [shape: bf16[128,128], index: 6, kind: input, shape index: {}]
  %s7 = inlined_call_operand.vmem [shape: f32[1,128], index: 7, kind: input, shape index: {}]
  %s8 = inlined_call_operand.hbm [shape: bf16[128,128], index: 8, kind: input, shape index: {}]
  %s9 = inlined_call_operand.vmem [shape: f32[1,128], index: 9, kind: input, shape index: {}]
  %s10 = inlined_call_operand.hbm [shape: f32[8,128], index: 10, kind: output, shape index: {0}]
  %s11 = inlined_call_operand.hbm [shape: f32[8,128], index: 11, kind: output, shape index: {1}]
  %12 = xla_tuple %s10, %s11
  %s13 = sld [smem:[#allocation0]]
  $region82: #{tpu_custom_call.1} parent=0
    _
  %s15 = ssub.s32 1, %s13
  %s16 = scalar_select 0, %s15, %s13
  $region1: #{tpu_custom_call.1} parent=0
    #allocation2 [shape = 'u8[2048]{0}', space=vmem, size = 0x800, scoped, tag = 'input window, operand 0, single buffered']
    #allocation3 [shape = 's32[1]{0}', space=sflag, size = 0x4, scoped, tag = 'scoped memory for tpu_custom_call.1']
    #allocation4 [shape = 's32[1]{0}', space=sflag, size = 0x4, scoped, tag = 'scoped memory for tpu_custom_call.1']
    #allocation5 [shape = 'u8[2048]{0}', space=vmem, size = 0x800, scoped, tag = 'input window, operand 1, single buffered']
    #allocation6 [shape = 's32[1]{0}', space=sflag, size = 0x4, scoped, tag = 'scoped memory for tpu_custom_call.1']
    #allocation7 [shape = 'u8[32768]{0}', space=vmem, size = 0x8000, scoped, tag = 'input window, operand 2, single buffered']
    #allocation8 [shape = 'u8[32768]{0}', space=vmem, size = 0x8000, scoped, tag = 'input window, operand 4, single buffered']
    #allocation9 [shape = 's32[1]{0}', space=sflag, size = 0x4, scoped, tag = 'scoped memory for tpu_custom_call.1']
    #allocation10 [shape = 'u8[32768]{0}', space=vmem, size = 0x8000, scoped, tag = 'input window, operand 6, single buffered']
    #allocation11 [shape = 'u8[32768]{0}', space=vmem, size = 0x8000, scoped, tag = 'input window, operand 8, single buffered']
    #allocation12 [shape = 's32[1]{0}', space=sflag, size = 0x4, scoped, tag = 'scoped memory for tpu_custom_call.1']
    #allocation13 [shape = 'u8[4096]{0}', space=vmem, size = 0x1000, scoped, tag = 'output window, operand 0, single buffered']
    #allocation14 [shape = 'u8[4096]{0}', space=vmem, size = 0x1000, scoped, tag = 'output window, operand 1, single buffered']
    #allocation15 [shape = 's32[1]{0}', space=sflag, size = 0x4, scoped, tag = 'scoped memory for tpu_custom_call.1']
    %17 = vsyncpa [#allocation3], 0
    %18 = vsyncpa [#allocation6], 0
    %19 = vsyncpa [#allocation9], 0
    %20 = vsyncpa [#allocation12], 0
    %21 = vsyncpa [#allocation4], 0
    %22 = vsyncpa [#allocation15], 0
    // Predicated region
    $region2: #{tpu_custom_call.1} parent=1 // pred_check
      _
    $region3: #{tpu_custom_call.1} parent=1 // pred_check_branch
      %24 = sbr.rel (0) target = $region5
    $region4: #{tpu_custom_call.1} parent=1 // pred_region
      %s26 = ssub.s32 64, 64
      %27 = vsyncadd [#allocation3], %s26
      %s29 = sshll.u32 [#allocation2], 4
      %s30 = int_to_ptr.vmem [resolvable:$true] %s29
      %32 = dma.hbm_to_vmem [thread:$0]  %s0, 64, %s30, [#allocation3]
    $region5: #{tpu_custom_call.1} parent=1 // pred_fallthru
      _
    // Predicated region
    $region6: #{tpu_custom_call.1} parent=1 // pred_check
      _
    $region7: #{tpu_custom_call.1} parent=1 // pred_check_branch
      %34 = sbr.rel (0) target = $region9
    $region8: #{tpu_custom_call.1} parent=1 // pred_region
      %s36 = ssub.s32 64, 64
      %37 = vsyncadd [#allocation6], %s36
      %s39 = sshll.u32 [#allocation5], 4
      %s40 = int_to_ptr.vmem [resolvable:$true] %s39
      %42 = dma.hbm_to_vmem [thread:$0]  %s1, 64, %s40, [#allocation6]
    $region9: #{tpu_custom_call.1} parent=1 // pred_fallthru
      _
    // Predicated region
    $region10: #{tpu_custom_call.1} parent=1 // pred_check
      _
    $region11: #{tpu_custom_call.1} parent=1 // pred_check_branch
      %44 = sbr.rel (0) target = $region13
    $region12: #{tpu_custom_call.1} parent=1 // pred_region
      %s46 = ssub.s32 1024, 1024
      %47 = vsyncadd [#allocation6], %s46
      %s48 = sshll.u32 [#allocation7], 4
      %s49 = int_to_ptr.vmem [resolvable:$true] %s48
      %54 = dma.hbm_to_vmem [thread:$0]  %s2, 1024, %s49, [#allocation6], 64, 64, 4
    $region13: #{tpu_custom_call.1} parent=1 // pred_fallthru
      _
    // Predicated region
    $region14: #{tpu_custom_call.1} parent=1 // pred_check
      _
    $region15: #{tpu_custom_call.1} parent=1 // pred_check_branch
      %56 = sbr.rel (0) target = $region17
    $region16: #{tpu_custom_call.1} parent=1 // pred_region
      _
    $region17: #{tpu_custom_call.1} parent=1 // pred_fallthru
      _
    // Predicated region
    $region18: #{tpu_custom_call.1} parent=1 // pred_check
      _
    $region19: #{tpu_custom_call.1} parent=1 // pred_check_branch
      %58 = sbr.rel (0) target = $region21
    $region20: #{tpu_custom_call.1} parent=1 // pred_region
      %s60 = ssub.s32 1024, 1024
      %61 = vsyncadd [#allocation9], %s60
      %s62 = sshll.u32 [#allocation8], 4
      %s63 = int_to_ptr.vmem [resolvable:$true] %s62
      %68 = dma.hbm_to_vmem [thread:$0]  %s4, 1024, %s63, [#allocation9], 64, 64, 4
    $region21: #{tpu_custom_call.1} parent=1 // pred_fallthru
      _
    // Predicated region
    $region22: #{tpu_custom_call.1} parent=1 // pred_check
      _
    $region23: #{tpu_custom_call.1} parent=1 // pred_check_branch
      %70 = sbr.rel (0) target = $region25
    $region24: #{tpu_custom_call.1} parent=1 // pred_region
      _
    $region25: #{tpu_custom_call.1} parent=1 // pred_fallthru
      _
    // Predicated region
    $region26: #{tpu_custom_call.1} parent=1 // pred_check
      _
    $region27: #{tpu_custom_call.1} parent=1 // pred_check_branch
      %72 = sbr.rel (0) target = $region29
    $region28: #{tpu_custom_call.1} parent=1 // pred_region
      %s74 = ssub.s32 1024, 1024
      %75 = vsyncadd [#allocation9], %s74
      %s76 = sshll.u32 [#allocation10], 4
      %s77 = int_to_ptr.vmem [resolvable:$true] %s76
      %82 = dma.hbm_to_vmem [thread:$0]  %s6, 1024, %s77, [#allocation9], 64, 64, 4
    $region29: #{tpu_custom_call.1} parent=1 // pred_fallthru
      _
    // Predicated region
    $region30: #{tpu_custom_call.1} parent=1 // pred_check
      _
    $region31: #{tpu_custom_call.1} parent=1 // pred_check_branch
      %84 = sbr.rel (0) target = $region33
    $region32: #{tpu_custom_call.1} parent=1 // pred_region
      _
    $region33: #{tpu_custom_call.1} parent=1 // pred_fallthru
      _
    // Predicated region
    $region34: #{tpu_custom_call.1} parent=1 // pred_check
      _
    $region35: #{tpu_custom_call.1} parent=1 // pred_check_branch
      %86 = sbr.rel (0) target = $region37
    $region36: #{tpu_custom_call.1} parent=1 // pred_region
      %s88 = ssub.s32 1024, 1024
      %89 = vsyncadd [#allocation12], %s88
      %s90 = sshll.u32 [#allocation11], 4
      %s91 = int_to_ptr.vmem [resolvable:$true] %s90
      %96 = dma.hbm_to_vmem [thread:$0]  %s8, 1024, %s91, [#allocation12], 64, 64, 4
    $region37: #{tpu_custom_call.1} parent=1 // pred_fallthru
      _
    // Predicated region
    $region38: #{tpu_custom_call.1} parent=1 // pred_check
      _
    $region39: #{tpu_custom_call.1} parent=1 // pred_check_branch
      %98 = sbr.rel (0) target = $region41
    $region40: #{tpu_custom_call.1} parent=1 // pred_region
      _
    $region41: #{tpu_custom_call.1} parent=1 // pred_fallthru
      _
    // Predicated region
    $region42: #{tpu_custom_call.1} parent=1 // pred_check
      _
    $region43: #{tpu_custom_call.1} parent=1 // pred_check_branch
      %100 = sbr.rel (0) target = $region45
    $region44: #{tpu_custom_call.1} parent=1 // pred_region
      %101 = dma.done [#allocation3], 64
    $region45: #{tpu_custom_call.1} parent=1 // pred_fallthru
      _
    // Predicated region
    $region46: #{tpu_custom_call.1} parent=1 // pred_check
      _
    $region47: #{tpu_custom_call.1} parent=1 // pred_check_branch
      %103 = sbr.rel (0) target = $region49
    $region48: #{tpu_custom_call.1} parent=1 // pred_region
      %104 = dma.done [#allocation6], 64
    $region49: #{tpu_custom_call.1} parent=1 // pred_fallthru
      _
    // Predicated region
    $region50: #{tpu_custom_call.1} parent=1 // pred_check
      _
    $region51: #{tpu_custom_call.1} parent=1 // pred_check_branch
      %106 = sbr.rel (0) target = $region53
    $region52: #{tpu_custom_call.1} parent=1 // pred_region
      %107 = dma.done [#allocation6], 1024
    $region53: #{tpu_custom_call.1} parent=1 // pred_fallthru
      _
    // Predicated region
    $region54: #{tpu_custom_call.1} parent=1 // pred_check
      _
    $region55: #{tpu_custom_call.1} parent=1 // pred_check_branch
      %109 = sbr.rel (0) target = $region57
    $region56: #{tpu_custom_call.1} parent=1 // pred_region
      %110 = dma.done [#allocation9], 1024
    $region57: #{tpu_custom_call.1} parent=1 // pred_fallthru
      _
    // Predicated region
    $region58: #{tpu_custom_call.1} parent=1 // pred_check
      _
    $region59: #{tpu_custom_call.1} parent=1 // pred_check_branch
      %112 = sbr.rel (0) target = $region61
    $region60: #{tpu_custom_call.1} parent=1 // pred_region
      %113 = dma.done [#allocation9], 1024
    $region61: #{tpu_custom_call.1} parent=1 // pred_fallthru
      _
    // Predicated region
    $region62: #{tpu_custom_call.1} parent=1 // pred_check
      _
    $region63: #{tpu_custom_call.1} parent=1 // pred_check_branch
      %115 = sbr.rel (0) target = $region65
    $region64: #{tpu_custom_call.1} parent=1 // pred_region
      %116 = dma.done [#allocation12], 1024
    $region65: #{tpu_custom_call.1} parent=1 // pred_fallthru
      _
    %v118 = vld [vmem:[#allocation2] sm:$0xf]
    %v119 = vld [vmem:[#allocation7] sm:$0xf]
    %v120 = vld [vmem:[#allocation7 + $0x4] sm:$0xf]
    %v121 = vld [vmem:[#allocation7 + $0x8] sm:$0xf]
    %v122 = vld [vmem:[#allocation7 + $0xc] sm:$0xf]
    %v123 = vld [vmem:[#allocation7 + $0x10] sm:$0xf]
    %v124 = vld [vmem:[#allocation7 + $0x14] sm:$0xf]
    %v125 = vld [vmem:[#allocation7 + $0x18] sm:$0xf]
    %v126 = vld [vmem:[#allocation7 + $0x1c] sm:$0xf]
    %v127 = vld [vmem:[#allocation7 + $0x20] sm:$0xf]
    %v128 = vld [vmem:[#allocation7 + $0x24] sm:$0xf]
    %v129 = vld [vmem:[#allocation7 + $0x28] sm:$0xf]
    %v130 = vld [vmem:[#allocation7 + $0x2c] sm:$0xf]
    %v131 = vld [vmem:[#allocation7 + $0x30] sm:$0xf]
    %v132 = vld [vmem:[#allocation7 + $0x34] sm:$0xf]
    %v133 = vld [vmem:[#allocation7 + $0x38] sm:$0xf]
    %v134 = vld [vmem:[#allocation7 + $0x3c] sm:$0xf]
    %v135 = vld [vmem:[%s3] sm:$0x1]
    %v137 = vlaneseq
    %v138 = vshrl.u32 %v137, 7
    %v139 = vsub.s32 0, %v138
    %v140 = vrot.slane %v135, %v139
    %v158 = vunpack.c.l.b16 %v119
    %v159 = vunpack.c.l.b16 %v120
    %v160 = vunpack.c.l.b16 %v121
    %v161 = vunpack.c.l.b16 %v122
    %v162 = vunpack.c.l.b16 %v123
    %v163 = vunpack.c.l.b16 %v124
    %v164 = vunpack.c.l.b16 %v125
    %v165 = vunpack.c.l.b16 %v126
    %v166 = vunpack.c.l.b16 %v127
    %v167 = vunpack.c.l.b16 %v128
    %v168 = vunpack.c.l.b16 %v129
    %v169 = vunpack.c.l.b16 %v130
    %v170 = vunpack.c.l.b16 %v131
    %v171 = vunpack.c.l.b16 %v132
    %v172 = vunpack.c.l.b16 %v133
    %v173 = vunpack.c.l.b16 %v134
    %v174 = vpack.c.b16 %v159, %v158
    %v175 = vpack.c.b16 %v161, %v160
    %v176 = vpack.c.b16 %v163, %v162
    %v177 = vpack.c.b16 %v165, %v164
    %v178 = vpack.c.b16 %v167, %v166
    %v179 = vpack.c.b16 %v169, %v168
    %v180 = vpack.c.b16 %v171, %v170
    %v181 = vpack.c.b16 %v173, %v172
    %190 = vmatprep.subr.bf16.mxu0 0
    %191 = vmatpush1.bf16.msra.mxu0 %v174
    %192 = vmatprep.subr.bf16.mxu0 0
    %193 = vmatpush1.bf16.msra.mxu0 %v175
    %194 = vmatprep.subr.bf16.mxu0 0
    %195 = vmatpush1.bf16.msra.mxu0 %v176
    %196 = vmatprep.subr.bf16.mxu0 0
    %197 = vmatpush1.bf16.msra.mxu0 %v177
    %198 = vmatprep.subr.bf16.mxu0 0
    %199 = vmatpush1.bf16.msra.mxu0 %v178
    %200 = vmatprep.subr.bf16.mxu0 0
    %201 = vmatpush1.bf16.msra.mxu0 %v179
    %202 = vmatprep.subr.bf16.mxu0 0
    %203 = vmatpush1.bf16.msra.mxu0 %v180
    %204 = vmatprep.subr.bf16.mxu0 0
    %205 = vmatpush1.bf16.msra.mxu0 %v181
    %206 = vmatprep.subr.bf16.mxu0 0
    %207 = vmatpush1.bf16.msra.mxu0 0
    %208 = vmatprep.subr.bf16.mxu0 0
    %209 = vmatpush1.bf16.msra.mxu0 0
    %210 = vmatprep.subr.bf16.mxu0 0
    %211 = vmatpush1.bf16.msra.mxu0 0
    %212 = vmatprep.subr.bf16.mxu0 0
    %213 = vmatpush1.bf16.msra.mxu0 0
    %214 = vmatprep.subr.bf16.mxu0 0
    %215 = vmatpush1.bf16.msra.mxu0 0
    %216 = vmatprep.subr.bf16.mxu0 0
    %217 = vmatpush1.bf16.msra.mxu0 0
    %218 = vmatprep.subr.bf16.mxu0 0
    %219 = vmatpush1.bf16.msra.mxu0 0
    %220 = vmatprep.subr.bf16.mxu0 0
    %221 = vmatpush1.bf16.msra.mxu0 0
    %222 = vmatprep.mubr.bf16.mxu0 0
    %223 = vmatmul.mubr.bf16.gmra.mrb[0].mxu0 %v118
    %v224 = vpop.f32.mrb[0].mxu0
    %v225 = vadd.f32 %v140, %v224
    %v226 = vpop.f32.mrb[0].mxu0
    %v227 = vpop.f32.mrb[0].mxu0
    %v228 = vpop.f32.mrb[0].mxu0
    %229 = vdwg.mxu0
    %v230 = vmax.f32 %v225, 0.0
    %v231 = vld [vmem:[#allocation5] sm:$0xf]
    %v232 = vld [vmem:[#allocation8] sm:$0xf]
    %v233 = vld [vmem:[#allocation8 + $0x4] sm:$0xf]
    %v234 = vld [vmem:[#allocation8 + $0x8] sm:$0xf]
    %v235 = vld [vmem:[#allocation8 + $0xc] sm:$0xf]
    %v236 = vld [vmem:[#allocation8 + $0x10] sm:$0xf]
    %v237 = vld [vmem:[#allocation8 + $0x14] sm:$0xf]
    %v238 = vld [vmem:[#allocation8 + $0x18] sm:$0xf]
    %v239 = vld [vmem:[#allocation8 + $0x1c] sm:$0xf]
    %v240 = vld [vmem:[#allocation8 + $0x20] sm:$0xf]
    %v241 = vld [vmem:[#allocation8 + $0x24] sm:$0xf]
    %v242 = vld [vmem:[#allocation8 + $0x28] sm:$0xf]
    %v243 = vld [vmem:[#allocation8 + $0x2c] sm:$0xf]
    %v244 = vld [vmem:[#allocation8 + $0x30] sm:$0xf]
    %v245 = vld [vmem:[#allocation8 + $0x34] sm:$0xf]
    %v246 = vld [vmem:[#allocation8 + $0x38] sm:$0xf]
    %v247 = vld [vmem:[#allocation8 + $0x3c] sm:$0xf]
    %v248 = vld [vmem:[%s5] sm:$0x1]
    %v250 = vlaneseq
    %v251 = vshrl.u32 %v250, 7
    %v252 = vsub.s32 0, %v251
    %v253 = vrot.slane %v248, %v252
    %v271 = vunpack.c.l.b16 %v232
    %v272 = vunpack.c.l.b16 %v233
    %v273 = vunpack.c.l.b16 %v234
    %v274 = vunpack.c.l.b16 %v235
    %v275 = vunpack.c.l.b16 %v236
    %v276 = vunpack.c.l.b16 %v237
    %v277 = vunpack.c.l.b16 %v238
    %v278 = vunpack.c.l.b16 %v239
    %v279 = vunpack.c.l.b16 %v240
    %v280 = vunpack.c.l.b16 %v241
    %v281 = vunpack.c.l.b16 %v242
    %v282 = vunpack.c.l.b16 %v243
    %v283 = vunpack.c.l.b16 %v244
    %v284 = vunpack.c.l.b16 %v245
    %v285 = vunpack.c.l.b16 %v246
    %v286 = vunpack.c.l.b16 %v247
    %v287 = vpack.c.b16 %v272, %v271
    %v288 = vpack.c.b16 %v274, %v273
    %v289 = vpack.c.b16 %v276, %v275
    %v290 = vpack.c.b16 %v278, %v277
    %v291 = vpack.c.b16 %v280, %v279
    %v292 = vpack.c.b16 %v282, %v281
    %v293 = vpack.c.b16 %v284, %v283
    %v294 = vpack.c.b16 %v286, %v285
    %303 = vmatprep.subr.bf16.mxu0 0
    %304 = vmatpush1.bf16.msra.mxu0 %v287
    %305 = vmatprep.subr.bf16.mxu0 0
    %306 = vmatpush1.bf16.msra.mxu0 %v288
    %307 = vmatprep.subr.bf16.mxu0 0
    %308 = vmatpush1.bf16.msra.mxu0 %v289
    %309 = vmatprep.subr.bf16.mxu0 0
    %310 = vmatpush1.bf16.msra.mxu0 %v290
    %311 = vmatprep.subr.bf16.mxu0 0
    %312 = vmatpush1.bf16.msra.mxu0 %v291
    %313 = vmatprep.subr.bf16.mxu0 0
    %314 = vmatpush1.bf16.msra.mxu0 %v292
    %315 = vmatprep.subr.bf16.mxu0 0
    %316 = vmatpush1.bf16.msra.mxu0 %v293
    %317 = vmatprep.subr.bf16.mxu0 0
    %318 = vmatpush1.bf16.msra.mxu0 %v294
    %319 = vmatprep.subr.bf16.mxu0 0
    %320 = vmatpush1.bf16.msra.mxu0 0
    %321 = vmatprep.subr.bf16.mxu0 0
    %322 = vmatpush1.bf16.msra.mxu0 0
    %323 = vmatprep.subr.bf16.mxu0 0
    %324 = vmatpush1.bf16.msra.mxu0 0
    %325 = vmatprep.subr.bf16.mxu0 0
    %326 = vmatpush1.bf16.msra.mxu0 0
    %327 = vmatprep.subr.bf16.mxu0 0
    %328 = vmatpush1.bf16.msra.mxu0 0
    %329 = vmatprep.subr.bf16.mxu0 0
    %330 = vmatpush1.bf16.msra.mxu0 0
    %331 = vmatprep.subr.bf16.mxu0 0
    %332 = vmatpush1.bf16.msra.mxu0 0
    %333 = vmatprep.subr.bf16.mxu0 0
    %334 = vmatpush1.bf16.msra.mxu0 0
    %335 = vmatprep.mubr.bf16.mxu0 0
    %336 = vmatmul.mubr.bf16.gmra.mrb[0].mxu0 %v231
    %v337 = vpop.f32.mrb[0].mxu0
    %v338 = vadd.f32 %v253, %v337
    %v339 = vpop.f32.mrb[0].mxu0
    %v340 = vpop.f32.mrb[0].mxu0
    %v341 = vpop.f32.mrb[0].mxu0
    %342 = vdwg.mxu0
    %v343 = vmax.f32 %v338, 0.0
    %v344 = vmul.f32 %v230, %v343
    %345 = vst [vmem:[#allocation13] sm:$0xff] %v344
    %v346 = vpack.c.bf16 %v344, %v344
    %v347 = vld [vmem:[#allocation10] sm:$0xf]
    %v348 = vld [vmem:[#allocation10 + $0x4] sm:$0xf]
    %v349 = vld [vmem:[#allocation10 + $0x8] sm:$0xf]
    %v350 = vld [vmem:[#allocation10 + $0xc] sm:$0xf]
    %v351 = vld [vmem:[#allocation10 + $0x10] sm:$0xf]
    %v352 = vld [vmem:[#allocation10 + $0x14] sm:$0xf]
    %v353 = vld [vmem:[#allocation10 + $0x18] sm:$0xf]
    %v354 = vld [vmem:[#allocation10 + $0x1c] sm:$0xf]
    %v355 = vld [vmem:[#allocation10 + $0x20] sm:$0xf]
    %v356 = vld [vmem:[#allocation10 + $0x24] sm:$0xf]
    %v357 = vld [vmem:[#allocation10 + $0x28] sm:$0xf]
    %v358 = vld [vmem:[#allocation10 + $0x2c] sm:$0xf]
    %v359 = vld [vmem:[#allocation10 + $0x30] sm:$0xf]
    %v360 = vld [vmem:[#allocation10 + $0x34] sm:$0xf]
    %v361 = vld [vmem:[#allocation10 + $0x38] sm:$0xf]
    %v362 = vld [vmem:[#allocation10 + $0x3c] sm:$0xf]
    %v363 = vld [vmem:[%s7] sm:$0x1]
    %v365 = vlaneseq
    %v366 = vshrl.u32 %v365, 7
    %v367 = vsub.s32 0, %v366
    %v368 = vrot.slane %v363, %v367
    %v386 = vunpack.c.l.b16 %v347
    %v387 = vunpack.c.l.b16 %v348
    %v388 = vunpack.c.l.b16 %v349
    %v389 = vunpack.c.l.b16 %v350
    %v390 = vunpack.c.l.b16 %v351
    %v391 = vunpack.c.l.b16 %v352
    %v392 = vunpack.c.l.b16 %v353
    %v393 = vunpack.c.l.b16 %v354
    %v394 = vunpack.c.l.b16 %v355
    %v395 = vunpack.c.l.b16 %v356
    %v396 = vunpack.c.l.b16 %v357
    %v397 = vunpack.c.l.b16 %v358
    %v398 = vunpack.c.l.b16 %v359
    %v399 = vunpack.c.l.b16 %v360
    %v400 = vunpack.c.l.b16 %v361
    %v401 = vunpack.c.l.b16 %v362
    %v402 = vpack.c.b16 %v387, %v386
    %v403 = vpack.c.b16 %v389, %v388
    %v404 = vpack.c.b16 %v391, %v390
    %v405 = vpack.c.b16 %v393, %v392
    %v406 = vpack.c.b16 %v395, %v394
    %v407 = vpack.c.b16 %v397, %v396
    %v408 = vpack.c.b16 %v399, %v398
    %v409 = vpack.c.b16 %v401, %v400
    %418 = vmatprep.subr.bf16.mxu0 0
    %419 = vmatpush1.bf16.msra.mxu0 %v402
    %420 = vmatprep.subr.bf16.mxu0 0
    %421 = vmatpush1.bf16.msra.mxu0 %v403
    %422 = vmatprep.subr.bf16.mxu0 0
    %423 = vmatpush1.bf16.msra.mxu0 %v404
    %424 = vmatprep.subr.bf16.mxu0 0
    %425 = vmatpush1.bf16.msra.mxu0 %v405
    %426 = vmatprep.subr.bf16.mxu0 0
    %427 = vmatpush1.bf16.msra.mxu0 %v406
    %428 = vmatprep.subr.bf16.mxu0 0
    %429 = vmatpush1.bf16.msra.mxu0 %v407
    %430 = vmatprep.subr.bf16.mxu0 0
    %431 = vmatpush1.bf16.msra.mxu0 %v408
    %432 = vmatprep.subr.bf16.mxu0 0
    %433 = vmatpush1.bf16.msra.mxu0 %v409
    %434 = vmatprep.subr.bf16.mxu0 0
    %435 = vmatpush1.bf16.msra.mxu0 0
    %436 = vmatprep.subr.bf16.mxu0 0
    %437 = vmatpush1.bf16.msra.mxu0 0
    %438 = vmatprep.subr.bf16.mxu0 0
    %439 = vmatpush1.bf16.msra.mxu0 0
    %440 = vmatprep.subr.bf16.mxu0 0
    %441 = vmatpush1.bf16.msra.mxu0 0
    %442 = vmatprep.subr.bf16.mxu0 0
    %443 = vmatpush1.bf16.msra.mxu0 0
    %444 = vmatprep.subr.bf16.mxu0 0
    %445 = vmatpush1.bf16.msra.mxu0 0
    %446 = vmatprep.subr.bf16.mxu0 0
    %447 = vmatpush1.bf16.msra.mxu0 0
    %448 = vmatprep.subr.bf16.mxu0 0
    %449 = vmatpush1.bf16.msra.mxu0 0
    %450 = vmatprep.mubr.bf16.mxu0 0
    %451 = vmatmul.mubr.bf16.gmra.mrb[0].mxu0 %v346
    %v452 = vpop.f32.mrb[0].mxu0
    %v453 = vadd.f32 %v368, %v452
    %v454 = vpop.f32.mrb[0].mxu0
    %v455 = vpop.f32.mrb[0].mxu0
    %v456 = vpop.f32.mrb[0].mxu0
    %457 = vdwg.mxu0
    %v458 = vmax.f32 %v453, 0.0
    %v459 = vpack.c.bf16 %v458, %v458
    %v460 = vld [vmem:[#allocation11] sm:$0xf]
    %v461 = vld [vmem:[#allocation11 + $0x4] sm:$0xf]
    %v462 = vld [vmem:[#allocation11 + $0x8] sm:$0xf]
    %v463 = vld [vmem:[#allocation11 + $0xc] sm:$0xf]
    %v464 = vld [vmem:[#allocation11 + $0x10] sm:$0xf]
    %v465 = vld [vmem:[#allocation11 + $0x14] sm:$0xf]
    %v466 = vld [vmem:[#allocation11 + $0x18] sm:$0xf]
    %v467 = vld [vmem:[#allocation11 + $0x1c] sm:$0xf]
    %v468 = vld [vmem:[#allocation11 + $0x20] sm:$0xf]
    %v469 = vld [vmem:[#allocation11 + $0x24] sm:$0xf]
    %v470 = vld [vmem:[#allocation11 + $0x28] sm:$0xf]
    %v471 = vld [vmem:[#allocation11 + $0x2c] sm:$0xf]
    %v472 = vld [vmem:[#allocation11 + $0x30] sm:$0xf]
    %v473 = vld [vmem:[#allocation11 + $0x34] sm:$0xf]
    %v474 = vld [vmem:[#allocation11 + $0x38] sm:$0xf]
    %v475 = vld [vmem:[#allocation11 + $0x3c] sm:$0xf]
    %v476 = vld [vmem:[%s9] sm:$0x1]
    %v478 = vlaneseq
    %v479 = vshrl.u32 %v478, 7
    %v480 = vsub.s32 0, %v479
    %v481 = vrot.slane %v476, %v480
    %v499 = vunpack.c.l.b16 %v460
    %v500 = vunpack.c.l.b16 %v461
    %v501 = vunpack.c.l.b16 %v462
    %v502 = vunpack.c.l.b16 %v463
    %v503 = vunpack.c.l.b16 %v464
    %v504 = vunpack.c.l.b16 %v465
    %v505 = vunpack.c.l.b16 %v466
    %v506 = vunpack.c.l.b16 %v467
    %v507 = vunpack.c.l.b16 %v468
    %v508 = vunpack.c.l.b16 %v469
    %v509 = vunpack.c.l.b16 %v470
    %v510 = vunpack.c.l.b16 %v471
    %v511 = vunpack.c.l.b16 %v472
    %v512 = vunpack.c.l.b16 %v473
    %v513 = vunpack.c.l.b16 %v474
    %v514 = vunpack.c.l.b16 %v475
    %v515 = vpack.c.b16 %v500, %v499
    %v516 = vpack.c.b16 %v502, %v501
    %v517 = vpack.c.b16 %v504, %v503
    %v518 = vpack.c.b16 %v506, %v505
    %v519 = vpack.c.b16 %v508, %v507
    %v520 = vpack.c.b16 %v510, %v509
    %v521 = vpack.c.b16 %v512, %v511
    %v522 = vpack.c.b16 %v514, %v513
    %531 = vmatprep.subr.bf16.mxu0 0
    %532 = vmatpush1.bf16.msra.mxu0 %v515
    %533 = vmatprep.subr.bf16.mxu0 0
    %534 = vmatpush1.bf16.msra.mxu0 %v516
    %535 = vmatprep.subr.bf16.mxu0 0
    %536 = vmatpush1.bf16.msra.mxu0 %v517
    %537 = vmatprep.subr.bf16.mxu0 0
    %538 = vmatpush1.bf16.msra.mxu0 %v518
    %539 = vmatprep.subr.bf16.mxu0 0
    %540 = vmatpush1.bf16.msra.mxu0 %v519
    %541 = vmatprep.subr.bf16.mxu0 0
    %542 = vmatpush1.bf16.msra.mxu0 %v520
    %543 = vmatprep.subr.bf16.mxu0 0
    %544 = vmatpush1.bf16.msra.mxu0 %v521
    %545 = vmatprep.subr.bf16.mxu0 0
    %546 = vmatpush1.bf16.msra.mxu0 %v522
    %547 = vmatprep.subr.bf16.mxu0 0
    %548 = vmatpush1.bf16.msra.mxu0 0
    %549 = vmatprep.subr.bf16.mxu0 0
    %550 = vmatpush1.bf16.msra.mxu0 0
    %551 = vmatprep.subr.bf16.mxu0 0
    %552 = vmatpush1.bf16.msra.mxu0 0
    %553 = vmatprep.subr.bf16.mxu0 0
    %554 = vmatpush1.bf16.msra.mxu0 0
    %555 = vmatprep.subr.bf16.mxu0 0
    %556 = vmatpush1.bf16.msra.mxu0 0
    %557 = vmatprep.subr.bf16.mxu0 0
    %558 = vmatpush1.bf16.msra.mxu0 0
    %559 = vmatprep.subr.bf16.mxu0 0
    %560 = vmatpush1.bf16.msra.mxu0 0
    %561 = vmatprep.subr.bf16.mxu0 0
    %562 = vmatpush1.bf16.msra.mxu0 0
    %563 = vmatprep.mubr.bf16.mxu0 0
    %564 = vmatmul.mubr.bf16.gmra.mrb[0].mxu0 %v459
    %v565 = vpop.f32.mrb[0].mxu0
    %v566 = vadd.f32 %v481, %v565
    %v567 = vpop.f32.mrb[0].mxu0
    %v568 = vpop.f32.mrb[0].mxu0
    %v569 = vpop.f32.mrb[0].mxu0
    %570 = vdwg.mxu0
    %571 = vst [vmem:[#allocation14] sm:$0xff] %v566
    // Predicated region
    $region66: #{tpu_custom_call.1} parent=1 // pred_check
      _
    $region67: #{tpu_custom_call.1} parent=1 // pred_check_branch
      %573 = sbr.rel (0) target = $region69
    $region68: #{tpu_custom_call.1} parent=1 // pred_region
      %s575 = ssub.s32 128, 128
      %576 = vsyncadd [#allocation4], %s575
      %s578 = sshll.u32 [#allocation13], 4
      %s579 = int_to_ptr.vmem [resolvable:$true] %s578
      %581 = dma.vmem_to_hbm [thread:$0]  %s579, 128, %s10, [#allocation4]
    $region69: #{tpu_custom_call.1} parent=1 // pred_fallthru
      _
    // Predicated region
    $region70: #{tpu_custom_call.1} parent=1 // pred_check
      _
    $region71: #{tpu_custom_call.1} parent=1 // pred_check_branch
      %583 = sbr.rel (0) target = $region73
    $region72: #{tpu_custom_call.1} parent=1 // pred_region
      %s585 = ssub.s32 128, 128
      %586 = vsyncadd [#allocation15], %s585
      %s588 = sshll.u32 [#allocation14], 4
      %s589 = int_to_ptr.vmem [resolvable:$true] %s588
      %591 = dma.vmem_to_hbm [thread:$0]  %s589, 128, %s11, [#allocation15]
    $region73: #{tpu_custom_call.1} parent=1 // pred_fallthru
      _
    // Predicated region
    $region74: #{tpu_custom_call.1} parent=1 // pred_check
      _
    $region75: #{tpu_custom_call.1} parent=1 // pred_check_branch
      %593 = sbr.rel (0) target = $region77
    $region76: #{tpu_custom_call.1} parent=1 // pred_region
      %594 = dma.done [#allocation4], 128
    $region77: #{tpu_custom_call.1} parent=1 // pred_fallthru
      _
    // Predicated region
    $region78: #{tpu_custom_call.1} parent=1 // pred_check
      _
    $region79: #{tpu_custom_call.1} parent=1 // pred_check_branch
      %596 = sbr.rel (0) target = $region81
    $region80: #{tpu_custom_call.1} parent=1 // pred_region
      %597 = dma.done [#allocation15], 128
    $region81: #{tpu_custom_call.1} parent=1 // pred_fallthru
      _
    %598 = vsyncpa [#allocation3], 1
    %599 = vsyncpa [#allocation6], 1
    %600 = vsyncpa [#allocation9], 1
    %601 = vsyncpa [#allocation12], 1
    %602 = vsyncpa [#allocation4], 1
    %603 = vsyncpa [#allocation15], 1

</llo_original>
